<compile_context>
chip_gen: v5e
topology: v5e:2x2
jax: 0.10.0
libtpu: 0.0.40
codegen_flags: <defaults>
</compile_context>

<pallas_src>
import jax
import jax.numpy as jnp
from jax.experimental import pallas as pl
from jax.experimental.pallas import tpu as pltpu

HIDDEN_DIM = 64      # module default hidden_dim
INPUT_SIZE = 1
DECODE_OUTPUT = 1
LANES = 128          # padded per-gate lane width (one full vreg of lanes)

# PyTorch LSTM gate order is [i, f, g, o]; we pack columns as [i, f, o, g] so
# the kernel applies one sigmoid over the first 3 gate blocks and one tanh
# over the last block.
_GATE_ORDER = (0, 1, 3, 2)


def decoder_kernel(x_ref, h0_ref, c0_ref, w_hh_ref, w_ixb_ref, wout_ref,
                   y_ref, state_out_ref, state_scr):
    H = w_hh_ref.shape[0]        # hidden_dim (static)
    P = wout_ref.shape[1]        # padded per-gate lane width (static)
    t = pl.program_id(0)

    # --- init the recurrent state carry (VMEM scratch persists across grid) ---
    @pl.when(t == 0)
    def _():
        state_scr[...] = jnp.zeros_like(state_scr)
        state_scr[0:1, 0:H] = h0_ref[...]
        state_scr[1:2, 0:H] = c0_ref[...]

    x_t = x_ref[t]                                   # scalar from SMEM
    h = state_scr[0:1, 0:H]                          # (1, H)   K-trimmed LHS
    c = state_scr[1:2, :]                            # (1, P)

    # gates = h @ W_hh^T  +  x * W_ih^T  +  (b_ih + b_hh), gate-aligned columns.
    gates = jnp.dot(h, w_hh_ref[...], preferred_element_type=jnp.float32)
    gates = gates + x_t * w_ixb_ref[0:1, :] + w_ixb_ref[1:2, :]     # (1, 4P)

    sig = jax.nn.sigmoid(gates[:, 0:3 * P])          # [i | f | o] in one EUP chain
    i_g = sig[:, 0 * P:1 * P]
    f_g = sig[:, 1 * P:2 * P]
    o_g = sig[:, 2 * P:3 * P]
    g_g = jnp.tanh(gates[:, 3 * P:4 * P])            # [g]

    c_n = f_g * c + i_g * g_g                        # (1, P), pad lanes stay 0
    h_n = o_g * jnp.tanh(c_n)                        # (1, P), pad lanes stay 0

    state_scr[0:1, :] = h_n
    state_scr[1:2, :] = c_n

    # y = sigmoid(h_n @ W_out^T + b_out) * 2  via VPU multiply + lane reduce
    # (wout row 0 = W_out zero-padded, row 1 = one-hot b_out).
    y = jnp.sum(h_n * wout_ref[0:1, :] + wout_ref[1:2, :], axis=-1, keepdims=True)
    y = jax.nn.sigmoid(y) * 2.0                      # (1, 1)
    y_ref[pl.ds(t, 1), :] = jnp.broadcast_to(y, (1, P))

    @pl.when(t == pl.num_programs(0) - 1)
    def _():
        state_out_ref[...] = state_scr[...]


def make_decoder_params(key, hidden_dim=HIDDEN_DIM, input_size=INPUT_SIZE,
                        decode_output=DECODE_OUTPUT):
    """Deterministic synthetic parameters matching nn.LSTM / nn.Linear shapes."""
    k = jax.random.split(key, 6)
    scale = 1.0 / jnp.sqrt(hidden_dim)
    w_ih = jax.random.uniform(k[0], (4 * hidden_dim, input_size), jnp.float32, -scale, scale)
    w_hh = jax.random.uniform(k[1], (4 * hidden_dim, hidden_dim), jnp.float32, -scale, scale)
    b_ih = jax.random.uniform(k[2], (4 * hidden_dim,), jnp.float32, -scale, scale)
    b_hh = jax.random.uniform(k[3], (4 * hidden_dim,), jnp.float32, -scale, scale)
    w_out = jax.random.uniform(k[4], (decode_output, hidden_dim), jnp.float32, -scale, scale)
    b_out = jax.random.uniform(k[5], (decode_output,), jnp.float32, -scale, scale)
    return dict(w_ih=w_ih, w_hh=w_hh, b_ih=b_ih, b_hh=b_hh, w_out=w_out, b_out=b_out)


def pack_decoder_weights(params):
    """Pack weights ONCE (at init) into the kernel's lane-aligned layout.

    Returns (w_hh_p (H, 4P), w_ixb (2, 4P), wout (2, P)).
    """
    H = params["w_hh"].shape[1]
    O = params["w_out"].shape[0]
    assert O == 1, "lane-reduce output path assumes decode_output == 1"
    assert params["w_ih"].shape[1] == 1, "x-as-scalar path assumes input_size == 1"
    P = LANES
    assert H <= P, "hidden_dim must fit in the padded lane width"
    f32 = jnp.float32

    def gate_align(mat_t):
        # (K, 4H) -> reorder gates to [i, f, o, g] and zero-pad each gate to P lanes.
        K = mat_t.shape[0]
        g = mat_t.reshape(K, 4, H)[:, list(_GATE_ORDER), :]
        return jnp.zeros((K, 4, P), f32).at[:, :, :H].set(g).reshape(K, 4 * P)

    w_hh_p = gate_align(params["w_hh"].T.astype(f32))                         # (H, 4P)
    w_ih_row = gate_align(params["w_ih"].T.astype(f32))                       # (1, 4P)
    b_row = gate_align((params["b_ih"] + params["b_hh"]).astype(f32).reshape(1, 4 * H))
    w_ixb = jnp.concatenate([w_ih_row, b_row], axis=0)                        # (2, 4P)

    wout = (jnp.zeros((2, P), f32)
            .at[0, :H].set(params["w_out"].astype(f32).reshape(H))
            .at[1, 0].set(params["b_out"].astype(f32)[0]))                    # (2, P)
    return w_hh_p, w_ixb, wout


@jax.jit
def decoder_decode(xs, input_hidden, input_cell, packed):
    """Fused autoregressive decode: T LSTM steps + output head in ONE pallas_call.

    xs: (T,) scalar inputs. Returns (ys (T, 1), hidden_T (1,1,H), cell_T (1,1,H)).
    """
    w_hh_p, w_ixb, wout = packed
    H = w_hh_p.shape[0]
    P = wout.shape[1]
    f32 = jnp.float32

    T = int(xs.shape[0])
    xs = jnp.reshape(xs, (T,)).astype(f32)
    h0 = jnp.reshape(input_hidden, (1, H)).astype(f32)
    c0 = jnp.reshape(input_cell, (1, H)).astype(f32)

    smem = pl.BlockSpec(memory_space=pltpu.MemorySpace.SMEM)
    vmem = pl.BlockSpec(memory_space=pltpu.MemorySpace.VMEM)

    y_slab, state = pl.pallas_call(
        decoder_kernel,
        out_shape=(jax.ShapeDtypeStruct((T, P), f32),      # per-step y, lane-dense
                   jax.ShapeDtypeStruct((2, P), f32)),      # final [h; c]
        grid_spec=pltpu.PrefetchScalarGridSpec(
            num_scalar_prefetch=0,
            grid=(T,),
            in_specs=[smem,                                  # xs  (T,)
                      vmem, vmem,                            # h0, c0 (1, H)
                      vmem, vmem, vmem],                     # w_hh, w_ixb, wout
            out_specs=[vmem, vmem],
            scratch_shapes=[pltpu.VMEM((2, P), f32)],        # [h; c] carry
        ),
        compiler_params=pltpu.CompilerParams(
            dimension_semantics=("arbitrary",)),             # recurrence over T
    )(xs, h0, c0, w_hh_p, w_ixb, wout)

    ys = y_slab[:, 0:1]                                      # (T, 1)
    h_n = state[0:1, 0:H].reshape(1, 1, H)
    c_n = state[1:2, 0:H].reshape(1, 1, H)
    return ys, h_n, c_n


def decoder_forward(x, input_hidden, input_cell, packed):
    """Mirrors Decoder.forward (single step): returns (y (1,1,1), hidden_n, cell_n)."""
    ys, h_n, c_n = decoder_decode(jnp.reshape(x, (1,)), input_hidden, input_cell, packed)
    return ys.reshape(1, 1, 1), h_n, c_n


def _reference_forward(x, input_hidden, input_cell, params):
    """Pure-JAX reference of the PyTorch forward for verification."""
    H = params["w_hh"].shape[1]
    x2 = jnp.reshape(x, (1, 1))
    h = jnp.reshape(input_hidden, (1, H))
    c = jnp.reshape(input_cell, (1, H))
    gates = x2 @ params["w_ih"].T + h @ params["w_hh"].T + params["b_ih"] + params["b_hh"]
    i = jax.nn.sigmoid(gates[:, 0 * H:1 * H])
    f = jax.nn.sigmoid(gates[:, 1 * H:2 * H])
    g = jnp.tanh(gates[:, 2 * H:3 * H])
    o = jax.nn.sigmoid(gates[:, 3 * H:4 * H])
    c_n = f * c + i * g
    h_n = o * jnp.tanh(c_n)
    y = jax.nn.sigmoid(h_n @ params["w_out"].T + params["b_out"]) * 2.0
    return y.reshape(1, 1, -1), h_n.reshape(1, 1, H), c_n.reshape(1, 1, H)


if __name__ == "__main__":
    key = jax.random.PRNGKey(0)
    k_p, k_x, k_h, k_c, k_xs = jax.random.split(key, 5)

    params = make_decoder_params(k_p)
    packed = pack_decoder_weights(params)        # packed once, reused for every call

    # --- single decode step: exactly the module's forward() semantics ---
    x = jax.random.normal(k_x, (1,), jnp.float32)
    input_hidden = jax.random.normal(k_h, (1, 1, HIDDEN_DIM), jnp.float32)
    input_cell = jax.random.normal(k_c, (1, 1, HIDDEN_DIM), jnp.float32)

    y, h_n, c_n = decoder_forward(x, input_hidden, input_cell, packed)
    jax.block_until_ready((y, h_n, c_n))

    y_ref, h_ref, c_ref = _reference_forward(x, input_hidden, input_cell, params)
    assert jnp.allclose(y, y_ref, atol=1e-5), "single-step output mismatch"
    assert jnp.allclose(h_n, h_ref, atol=1e-5), "single-step hidden mismatch"
    assert jnp.allclose(c_n, c_ref, atol=1e-5), "single-step cell mismatch"

    # --- fused multi-step autoregressive decode: T steps in one pallas_call ---
    T = 8
    xs = jax.random.normal(k_xs, (T,), jnp.float32)
    ys, h_T, c_T = decoder_decode(xs, input_hidden, input_cell, packed)
    jax.block_until_ready((ys, h_T, c_T))

    yr = []
    hr, cr = input_hidden, input_cell
    for t in range(T):
        y_t, hr, cr = _reference_forward(xs[t], hr, cr, params)
        yr.append(y_t.reshape(1))
    yr = jnp.stack(yr, axis=0)                   # (T, 1)
    assert jnp.allclose(ys, yr, atol=1e-4), "multi-step output mismatch"
    assert jnp.allclose(h_T, hr, atol=1e-4), "multi-step hidden mismatch"
    assert jnp.allclose(c_T, cr, atol=1e-4), "multi-step cell mismatch"

    print("KERNEL_OK")
</pallas_src>

<mosaic_0001>
module attributes {stable_mosaic.version = 11 : i64} {
  func.func @decoder_kernel(%arg0: i32, %arg1: memref<1xf32, #tpu.memory_space<smem>>, %arg2: memref<1x64xf32, #tpu.memory_space<vmem>>, %arg3: memref<1x64xf32, #tpu.memory_space<vmem>>, %arg4: memref<64x512xf32, #tpu.memory_space<vmem>>, %arg5: memref<2x512xf32, #tpu.memory_space<vmem>>, %arg6: memref<2x128xf32, #tpu.memory_space<vmem>>, %arg7: memref<1x128xf32, #tpu.memory_space<vmem>>, %arg8: memref<2x128xf32, #tpu.memory_space<vmem>>, %arg9: memref<2x128xf32, #tpu.memory_space<vmem>>) attributes {dimension_semantics = [#tpu.dimension_semantics<arbitrary>], iteration_bounds = array<i64: 1>, scalar_prefetch = 0 : i64, scratch_operands = 1 : i64, tpu.core_type = #tpu.core_type<tc>, window_params = [{transform_indices = @transform_0, window_bounds = array<i64: 1>}, {pipeline_mode = #tpu.pipeline_mode<synchronous>, transform_indices = @transform_1, window_bounds = array<i64: 1, 64>}, {pipeline_mode = #tpu.pipeline_mode<synchronous>, transform_indices = @transform_2, window_bounds = array<i64: 1, 64>}, {pipeline_mode = #tpu.pipeline_mode<synchronous>, transform_indices = @transform_3, window_bounds = array<i64: 64, 512>}, {pipeline_mode = #tpu.pipeline_mode<synchronous>, transform_indices = @transform_4, window_bounds = array<i64: 2, 512>}, {pipeline_mode = #tpu.pipeline_mode<synchronous>, transform_indices = @transform_5, window_bounds = array<i64: 2, 128>}, {pipeline_mode = #tpu.pipeline_mode<synchronous>, transform_indices = @transform_6, window_bounds = array<i64: 1, 128>}, {pipeline_mode = #tpu.pipeline_mode<synchronous>, transform_indices = @transform_7, window_bounds = array<i64: 2, 128>}]} {
    %c0_i32 = arith.constant 0 : i32
    %0 = arith.cmpi eq, %arg0, %c0_i32 : i32
    %1 = arith.extui %0 : i1 to i32
    %c0_i32_0 = arith.constant 0 : i32
    %2 = arith.cmpi ne, %1, %c0_i32_0 : i32
    scf.if %2 {
      %cst_24 = arith.constant 0.000000e+00 : f32
      %53 = vector.broadcast %cst_24 : f32 to vector<2x128xf32>
      %c0_25 = arith.constant 0 : index
      %c0_26 = arith.constant 0 : index
      %54 = vector.load %arg9[%c0_25, %c0_26] : memref<2x128xf32, #tpu.memory_space<vmem>>, vector<2x128xf32>
      tpu.vector_store %arg9[%c0_25, %c0_26], %53 {strides = array<i32>} : memref<2x128xf32, #tpu.memory_space<vmem>>, vector<2x128xf32>,
      %c0_27 = arith.constant 0 : index
      %c0_28 = arith.constant 0 : index
      %55 = vector.load %arg2[%c0_27, %c0_28] : memref<1x64xf32, #tpu.memory_space<vmem>>, vector<1x64xf32>
      %c0_29 = arith.constant 0 : index
      %c0_30 = arith.constant 0 : index
      %56 = vector.load %arg9[%c0_29, %c0_30] : memref<2x128xf32, #tpu.memory_space<vmem>>, vector<1x64xf32>
      tpu.vector_store %arg9[%c0_29, %c0_30], %55 {strides = array<i32>} : memref<2x128xf32, #tpu.memory_space<vmem>>, vector<1x64xf32>,
      %c0_31 = arith.constant 0 : index
      %c0_32 = arith.constant 0 : index
      %57 = vector.load %arg3[%c0_31, %c0_32] : memref<1x64xf32, #tpu.memory_space<vmem>>, vector<1x64xf32>
      %c1_33 = arith.constant 1 : index
      %c0_34 = arith.constant 0 : index
      %58 = vector.load %arg9[%c1_33, %c0_34] : memref<2x128xf32, #tpu.memory_space<vmem>>, vector<1x64xf32>
      tpu.vector_store %arg9[%c1_33, %c0_34], %57 {strides = array<i32>} : memref<2x128xf32, #tpu.memory_space<vmem>>, vector<1x64xf32>,
    } else {
    }
    %3 = arith.index_cast %arg0 : i32 to index
    %4 = memref.load %arg1[%3] : memref<1xf32, #tpu.memory_space<smem>>
    %c0 = arith.constant 0 : index
    %c0_1 = arith.constant 0 : index
    %5 = vector.load %arg9[%c0, %c0_1] : memref<2x128xf32, #tpu.memory_space<vmem>>, vector<1x64xf32>
    %c1 = arith.constant 1 : index
    %c0_2 = arith.constant 0 : index
    %6 = vector.load %arg9[%c1, %c0_2] : memref<2x128xf32, #tpu.memory_space<vmem>>, vector<1x128xf32>
    %c0_3 = arith.constant 0 : index
    %c0_4 = arith.constant 0 : index
    %7 = vector.load %arg4[%c0_3, %c0_4] : memref<64x512xf32, #tpu.memory_space<vmem>>, vector<64x512xf32>
    %cst = arith.constant dense<0.000000e+00> : vector<1x512xf32>
    %8 = tpu.matmul %5, %7, %cst {dimension_numbers = #tpu.dot_dimension_numbers<[1], [0], [0], [1], [0, 0, 1, 1], [], []>} : vector<1x64xf32>, vector<64x512xf32>, vector<1x512xf32> -> vector<1x512xf32>
    %c0_5 = arith.constant 0 : index
    %c0_6 = arith.constant 0 : index
    %9 = vector.load %arg5[%c0_5, %c0_6] : memref<2x512xf32, #tpu.memory_space<vmem>>, vector<1x512xf32>
    %10 = vector.broadcast %4 : f32 to vector<1x512xf32>
    %11 = arith.mulf %10, %9 : vector<1x512xf32>
    %12 = arith.addf %8, %11 : vector<1x512xf32>
    %c1_7 = arith.constant 1 : index
    %c0_8 = arith.constant 0 : index
    %13 = vector.load %arg5[%c1_7, %c0_8] : memref<2x512xf32, #tpu.memory_space<vmem>>, vector<1x512xf32>
    %14 = arith.addf %12, %13 : vector<1x512xf32>
    %15 = vector.extract_strided_slice %14 {offsets = [0, 0], sizes = [1, 384], strides = [1, 1]} : vector<1x512xf32> to vector<1x384xf32>
    %16 = arith.negf %15 : vector<1x384xf32>
    %17 = math.exp %16 : vector<1x384xf32>
    %cst_9 = arith.constant 1.000000e+00 : f32
    %18 = vector.broadcast %cst_9 : f32 to vector<1x384xf32>
    %19 = arith.addf %18, %17 : vector<1x384xf32>
    %20 = arith.divf %18, %19 : vector<1x384xf32>
    %21 = vector.extract_strided_slice %20 {offsets = [0, 0], sizes = [1, 128], strides = [1, 1]} : vector<1x384xf32> to vector<1x128xf32>
    %22 = vector.extract_strided_slice %20 {offsets = [0, 128], sizes = [1, 128], strides = [1, 1]} : vector<1x384xf32> to vector<1x128xf32>
    %23 = vector.extract_strided_slice %20 {offsets = [0, 256], sizes = [1, 128], strides = [1, 1]} : vector<1x384xf32> to vector<1x128xf32>
    %24 = vector.extract_strided_slice %14 {offsets = [0, 384], sizes = [1, 128], strides = [1, 1]} : vector<1x512xf32> to vector<1x128xf32>
    %25 = math.tanh %24 : vector<1x128xf32>
    %26 = arith.mulf %22, %6 : vector<1x128xf32>
    %27 = arith.mulf %21, %25 : vector<1x128xf32>
    %28 = arith.addf %26, %27 : vector<1x128xf32>
    %29 = math.tanh %28 : vector<1x128xf32>
    %30 = arith.mulf %23, %29 : vector<1x128xf32>
    %c0_10 = arith.constant 0 : index
    %c0_11 = arith.constant 0 : index
    %31 = vector.load %arg9[%c0_10, %c0_11] : memref<2x128xf32, #tpu.memory_space<vmem>>, vector<1x128xf32>
    tpu.vector_store %arg9[%c0_10, %c0_11], %30 {strides = array<i32>} : memref<2x128xf32, #tpu.memory_space<vmem>>, vector<1x128xf32>,
    %c1_12 = arith.constant 1 : index
    %c0_13 = arith.constant 0 : index
    %32 = vector.load %arg9[%c1_12, %c0_13] : memref<2x128xf32, #tpu.memory_space<vmem>>, vector<1x128xf32>
    tpu.vector_store %arg9[%c1_12, %c0_13], %28 {strides = array<i32>} : memref<2x128xf32, #tpu.memory_space<vmem>>, vector<1x128xf32>,
    %c0_14 = arith.constant 0 : index
    %c0_15 = arith.constant 0 : index
    %33 = vector.load %arg6[%c0_14, %c0_15] : memref<2x128xf32, #tpu.memory_space<vmem>>, vector<1x128xf32>
    %34 = arith.mulf %30, %33 : vector<1x128xf32>
    %c1_16 = arith.constant 1 : index
    %c0_17 = arith.constant 0 : index
    %35 = vector.load %arg6[%c1_16, %c0_17] : memref<2x128xf32, #tpu.memory_space<vmem>>, vector<1x128xf32>
    %36 = arith.addf %34, %35 : vector<1x128xf32>
    %cst_18 = arith.constant dense<0.000000e+00> : vector<1xf32>
    %37 = vector.multi_reduction <add>, %36, %cst_18 [1] : vector<1x128xf32> to vector<1xf32>
    %38 = vector.shape_cast %37 : vector<1xf32> to vector<1x1xf32>
    %39 = arith.negf %38 : vector<1x1xf32>
    %40 = math.exp %39 : vector<1x1xf32>
    %cst_19 = arith.constant 1.000000e+00 : f32
    %41 = vector.broadcast %cst_19 : f32 to vector<1x1xf32>
    %42 = arith.addf %41, %40 : vector<1x1xf32>
    %43 = arith.divf %41, %42 : vector<1x1xf32>
    %cst_20 = arith.constant 2.000000e+00 : f32
    %44 = vector.broadcast %cst_20 : f32 to vector<1x1xf32>
    %45 = arith.mulf %43, %44 : vector<1x1xf32>
    %46 = vector.shape_cast %45 : vector<1x1xf32> to vector<1x1xf32>
    %47 = vector.broadcast %46 : vector<1x1xf32> to vector<1x128xf32>
    %48 = arith.index_cast %arg0 : i32 to index
    %c0_21 = arith.constant 0 : index
    %49 = vector.load %arg7[%48, %c0_21] : memref<1x128xf32, #tpu.memory_space<vmem>>, vector<1x128xf32>
    tpu.vector_store %arg7[%48, %c0_21], %47 {strides = array<i32>} : memref<1x128xf32, #tpu.memory_space<vmem>>, vector<1x128xf32>,
    %c0_i32_22 = arith.constant 0 : i32
    %50 = arith.cmpi eq, %arg0, %c0_i32_22 : i32
    %51 = arith.extui %50 : i1 to i32
    %c0_i32_23 = arith.constant 0 : i32
    %52 = arith.cmpi ne, %51, %c0_i32_23 : i32
    scf.if %52 {
      %c0_24 = arith.constant 0 : index
      %c0_25 = arith.constant 0 : index
      %53 = vector.load %arg9[%c0_24, %c0_25] : memref<2x128xf32, #tpu.memory_space<vmem>>, vector<2x128xf32>
      %c0_26 = arith.constant 0 : index
      %c0_27 = arith.constant 0 : index
      %54 = vector.load %arg8[%c0_26, %c0_27] : memref<2x128xf32, #tpu.memory_space<vmem>>, vector<2x128xf32>
      tpu.vector_store %arg8[%c0_26, %c0_27], %53 {strides = array<i32>} : memref<2x128xf32, #tpu.memory_space<vmem>>, vector<2x128xf32>,
    } else {
    }
    return
  }
  func.func @transform_0(%arg0: i32) -> i32 {
    %c0_i32 = arith.constant 0 : i32
    %c0_i32_0 = arith.constant 0 : i32
    return %c0_i32 : i32
  }
  func.func @transform_1(%arg0: i32) -> (i32, i32) {
    %c0_i32 = arith.constant 0 : i32
    %c0_i32_0 = arith.constant 0 : i32
    %c0_i32_1 = arith.constant 0 : i32
    return %c0_i32, %c0_i32_0 : i32, i32
  }
  func.func @transform_2(%arg0: i32) -> (i32, i32) {
    %c0_i32 = arith.constant 0 : i32
    %c0_i32_0 = arith.constant 0 : i32
    %c0_i32_1 = arith.constant 0 : i32
    return %c0_i32, %c0_i32_0 : i32, i32
  }
  func.func @transform_3(%arg0: i32) -> (i32, i32) {
    %c0_i32 = arith.constant 0 : i32
    %c0_i32_0 = arith.constant 0 : i32
    %c0_i32_1 = arith.constant 0 : i32
    return %c0_i32, %c0_i32_0 : i32, i32
  }
  func.func @transform_4(%arg0: i32) -> (i32, i32) {
    %c0_i32 = arith.constant 0 : i32
    %c0_i32_0 = arith.constant 0 : i32
    %c0_i32_1 = arith.constant 0 : i32
    return %c0_i32, %c0_i32_0 : i32, i32
  }
  func.func @transform_5(%arg0: i32) -> (i32, i32) {
    %c0_i32 = arith.constant 0 : i32
    %c0_i32_0 = arith.constant 0 : i32
    %c0_i32_1 = arith.constant 0 : i32
    return %c0_i32, %c0_i32_0 : i32, i32
  }
  func.func @transform_6(%arg0: i32) -> (i32, i32) {
    %c0_i32 = arith.constant 0 : i32
    %c0_i32_0 = arith.constant 0 : i32
    %c0_i32_1 = arith.constant 0 : i32
    return %c0_i32, %c0_i32_0 : i32, i32
  }
  func.func @transform_7(%arg0: i32) -> (i32, i32) {
    %c0_i32 = arith.constant 0 : i32
    %c0_i32_0 = arith.constant 0 : i32
    %c0_i32_1 = arith.constant 0 : i32
    return %c0_i32, %c0_i32_0 : i32, i32
  }
}

</mosaic_0001>

<llo_original>
// kernel: decoder_decode.1
$region0: #{decoder_decode.1}
  #allocation0 [shape = 'u32[]', space=smem, size = 0x4, offset = 0x4, fixed_abs, tag = 'smem constant byte address 0x4 - core index']
  #allocation1 [shape = 'u32[72,128]{1,0:T(1,128)}', space=vmem, size = 0x9000, scoped, tag = 'internal scratch']
  #allocation2 [shape = 'f32[2,128]{1,0:T(2,128)}', space=vmem, size = 0x400, scoped, tag = 'scratch operand']
  #allocation3 [shape = 'f32[1]{0:T(128)S(6)}', space=smem, size = 0x200, scoped, tag = 'scoped memory for decoder_decode.1']
  %s0 = inlined_call_operand.<no memory space> [shape: f32[1], index: 0, kind: input, shape index: {}]
  %s1 = inlined_call_operand.vmem [shape: f32[1,64], index: 1, kind: input, shape index: {}]
  %s2 = inlined_call_operand.vmem [shape: f32[1,64], index: 2, kind: input, shape index: {}]
  %s3 = inlined_call_operand.hbm [shape: f32[64,512], index: 3, kind: input, shape index: {}]
  %s4 = inlined_call_operand.hbm [shape: f32[2,512], index: 4, kind: input, shape index: {}]
  %s5 = inlined_call_operand.vmem [shape: f32[2,128], index: 5, kind: input, shape index: {}]
  %s6 = inlined_call_operand.hbm [shape: f32[1,128], index: 6, kind: output, shape index: {0}]
  %s7 = inlined_call_operand.vmem [shape: f32[2,128], index: 7, kind: output, shape index: {1}]
  %8 = xla_tuple %s6, %s7
  %s9 = sld [smem:[#allocation0]]
  $region58: #{decoder_decode.1} parent=0
    _
  %s11 = ssub.s32 1, %s9
  %s12 = scalar_select 0, %s11, %s9
  %13 = sst [smem:[#allocation3]] %s0
  $region1: #{decoder_decode.1} parent=0
    #allocation4 [shape = 'u8[131072]{0}', space=vmem, size = 0x20000, scoped, tag = 'input window, operand 3, single buffered']
    #allocation5 [shape = 's32[1]{0}', space=sflag, size = 0x4, scoped, tag = 'scoped memory for decoder_decode.1']
    #allocation6 [shape = 's32[1]{0}', space=sflag, size = 0x4, scoped, tag = 'scoped memory for decoder_decode.1']
    #allocation7 [shape = 'u8[4096]{0}', space=vmem, size = 0x1000, scoped, tag = 'input window, operand 4, single buffered']
    #allocation8 [shape = 's32[1]{0}', space=sflag, size = 0x4, scoped, tag = 'scoped memory for decoder_decode.1']
    #allocation9 [shape = 'u8[512]{0}', space=vmem, size = 0x400, scoped, tag = 'output window, operand 0, single buffered']
    %14 = vsyncpa [#allocation5], 0
    %15 = vsyncpa [#allocation8], 0
    %16 = vsyncpa [#allocation6], 0
    // Predicated region
    $region2: #{decoder_decode.1} parent=1 // pred_check
      _
    $region3: #{decoder_decode.1} parent=1 // pred_check_branch
      %18 = sbr.rel (0) target = $region5
    $region4: #{decoder_decode.1} parent=1 // pred_region
      _
    $region5: #{decoder_decode.1} parent=1 // pred_fallthru
      _
    // Predicated region
    $region6: #{decoder_decode.1} parent=1 // pred_check
      _
    $region7: #{decoder_decode.1} parent=1 // pred_check_branch
      %20 = sbr.rel (0) target = $region9
    $region8: #{decoder_decode.1} parent=1 // pred_region
      _
    $region9: #{decoder_decode.1} parent=1 // pred_fallthru
      _
    // Predicated region
    $region10: #{decoder_decode.1} parent=1 // pred_check
      _
    $region11: #{decoder_decode.1} parent=1 // pred_check_branch
      %22 = sbr.rel (0) target = $region13
    $region12: #{decoder_decode.1} parent=1 // pred_region
      _
    $region13: #{decoder_decode.1} parent=1 // pred_fallthru
      _
    // Predicated region
    $region14: #{decoder_decode.1} parent=1 // pred_check
      _
    $region15: #{decoder_decode.1} parent=1 // pred_check_branch
      %24 = sbr.rel (0) target = $region17
    $region16: #{decoder_decode.1} parent=1 // pred_region
      %26 = vsyncadd [#allocation5], 0
      %s27 = sshll.u32 %s3, 4
      %s28 = int_to_ptr.hbm [resolvable:$true] %s27
      %s29 = sshll.u32 [#allocation4], 4
      %s30 = int_to_ptr.vmem [resolvable:$true] %s29
      %35 = dma.hbm_to_vmem [thread:$0]  %s28, 4096, %s30, [#allocation5], 512, 512, 32
    $region17: #{decoder_decode.1} parent=1 // pred_fallthru
      _
    // Predicated region
    $region18: #{decoder_decode.1} parent=1 // pred_check
      _
    $region19: #{decoder_decode.1} parent=1 // pred_check_branch
      %37 = sbr.rel (0) target = $region21
    $region20: #{decoder_decode.1} parent=1 // pred_region
      %39 = vsyncadd [#allocation8], 0
      %s41 = sshll.u32 %s4, 4
      %s42 = int_to_ptr.hbm [resolvable:$true] %s41
      %s43 = sshll.u32 [#allocation7], 4
      %s44 = int_to_ptr.vmem [resolvable:$true] %s43
      %46 = dma.hbm_to_vmem [thread:$0]  %s42, 128, %s44, [#allocation8]
    $region21: #{decoder_decode.1} parent=1 // pred_fallthru
      _
    // Predicated region
    $region22: #{decoder_decode.1} parent=1 // pred_check
      _
    $region23: #{decoder_decode.1} parent=1 // pred_check_branch
      %48 = sbr.rel (0) target = $region25
    $region24: #{decoder_decode.1} parent=1 // pred_region
      _
    $region25: #{decoder_decode.1} parent=1 // pred_fallthru
      _
    // Predicated region
    $region26: #{decoder_decode.1} parent=1 // pred_check
      _
    $region27: #{decoder_decode.1} parent=1 // pred_check_branch
      %50 = sbr.rel (0) target = $region29
    $region28: #{decoder_decode.1} parent=1 // pred_region
      %52 = dma.done [#allocation5], 4096
    $region29: #{decoder_decode.1} parent=1 // pred_fallthru
      _
    // Predicated region
    $region30: #{decoder_decode.1} parent=1 // pred_check
      _
    $region31: #{decoder_decode.1} parent=1 // pred_check_branch
      %54 = sbr.rel (0) target = $region33
    $region32: #{decoder_decode.1} parent=1 // pred_region
      %56 = dma.done [#allocation8], 128
    $region33: #{decoder_decode.1} parent=1 // pred_fallthru
      _
    %p57 = scmp.eq.s32.totalorder 0, 0
    // Predicated region
    $region34: #{decoder_decode.1} parent=1 // pred_check
      %p58 = pneg %p57
    $region35: #{decoder_decode.1} parent=1 // pred_check_branch
      %60 = sbr.rel (%p58) target = $region37
    $region36: #{decoder_decode.1} parent=1 // pred_region
      %61 = vst [vmem:[#allocation2] sm:$0x3] 0.0
      %v62 = vld [vmem:[%s1] sm:$0x1]
      %vm63 = vcmask 516096
      %64 = vst.msk [vmem:[#allocation2] sm:$0x1] %vm63, %v62
      %v65 = vld [vmem:[%s2] sm:$0x1]
      %66 = vst.msk [vmem:[#allocation2 + $0x1] sm:$0x1] %vm63, %v65
    $region37: #{decoder_decode.1} parent=1 // pred_fallthru
      _
    %s67 = sld [smem:[#allocation3]]
    %v68 = vld [vmem:[#allocation2] sm:$0x1]
    %v69 = vld [vmem:[#allocation2 + $0x1] sm:$0x1]
    %v70 = vld [vmem:[#allocation4] sm:$0xff]
    %v71 = vld [vmem:[#allocation4 + $0x8] sm:$0xff]
    %v72 = vld [vmem:[#allocation4 + $0x10] sm:$0xff]
    %v73 = vld [vmem:[#allocation4 + $0x18] sm:$0xff]
    %v74 = vld [vmem:[#allocation4 + $0x20] sm:$0xff]
    %v75 = vld [vmem:[#allocation4 + $0x28] sm:$0xff]
    %v76 = vld [vmem:[#allocation4 + $0x30] sm:$0xff]
    %v77 = vld [vmem:[#allocation4 + $0x38] sm:$0xff]
    %v78 = vld [vmem:[#allocation4 + $0x40] sm:$0xff]
    %v79 = vld [vmem:[#allocation4 + $0x48] sm:$0xff]
    %v80 = vld [vmem:[#allocation4 + $0x50] sm:$0xff]
    %v81 = vld [vmem:[#allocation4 + $0x58] sm:$0xff]
    %v82 = vld [vmem:[#allocation4 + $0x60] sm:$0xff]
    %v83 = vld [vmem:[#allocation4 + $0x68] sm:$0xff]
    %v84 = vld [vmem:[#allocation4 + $0x70] sm:$0xff]
    %v85 = vld [vmem:[#allocation4 + $0x78] sm:$0xff]
    %v86 = vld [vmem:[#allocation4 + $0x80] sm:$0xff]
    %v87 = vld [vmem:[#allocation4 + $0x88] sm:$0xff]
    %v88 = vld [vmem:[#allocation4 + $0x90] sm:$0xff]
    %v89 = vld [vmem:[#allocation4 + $0x98] sm:$0xff]
    %v90 = vld [vmem:[#allocation4 + $0xa0] sm:$0xff]
    %v91 = vld [vmem:[#allocation4 + $0xa8] sm:$0xff]
    %v92 = vld [vmem:[#allocation4 + $0xb0] sm:$0xff]
    %v93 = vld [vmem:[#allocation4 + $0xb8] sm:$0xff]
    %v94 = vld [vmem:[#allocation4 + $0xc0] sm:$0xff]
    %v95 = vld [vmem:[#allocation4 + $0xc8] sm:$0xff]
    %v96 = vld [vmem:[#allocation4 + $0xd0] sm:$0xff]
    %v97 = vld [vmem:[#allocation4 + $0xd8] sm:$0xff]
    %v98 = vld [vmem:[#allocation4 + $0xe0] sm:$0xff]
    %v99 = vld [vmem:[#allocation4 + $0xe8] sm:$0xff]
    %v100 = vld [vmem:[#allocation4 + $0xf0] sm:$0xff]
    %v101 = vld [vmem:[#allocation4 + $0xf8] sm:$0xff]
    %v102 = vld [vmem:[#allocation7] ss:$2 sm:$0xf]
    %v103 = vstv %s67
    %v104 = vmul.f32 %v103, %v102
    %v106 = vperm.slane %v104, 0
    %v107 = vperm.slane %v104, 1
    %v108 = vperm.slane %v104, 2
    %v109 = vperm.slane %v104, 3
    %vm114 = vcmask 523264
    %v116 = vsel %vm114, %v68, 0
    %118 = vmatpush.msra.mxu0 0.0
    %119 = vmatpush.msra.mxu0 0.0
    %120 = vmatpush.msra.mxu0 0.0
    %121 = vmatpush.msra.mxu0 0.0
    %122 = vmatpush.msra.mxu0 0.0
    %123 = vmatpush.msra.mxu0 0.0
    %124 = vmatpush.msra.mxu0 0.0
    %125 = vmatpush.msra.mxu0 0.0
    %126 = vmatpush.msra.mxu0 %v98
    %127 = vmatpush.msra.mxu0 %v94
    %128 = vmatpush.msra.mxu0 %v90
    %129 = vmatpush.msra.mxu0 %v86
    %130 = vmatpush.msra.mxu0 %v82
    %131 = vmatpush.msra.mxu0 %v78
    %132 = vmatpush.msra.mxu0 %v74
    %133 = vmatpush.msra.mxu0 %v70
    %134 = vmatmul.f32.gmra.mxu0 %v116
    %v135 = vpop.f32.mrf.mxu0
    %v136 = vadd.f32 %v106, %v135
    %137 = vdwg.mxu0
    %138 = vmatpush.msra.mxu0 0.0
    %139 = vmatpush.msra.mxu0 0.0
    %140 = vmatpush.msra.mxu0 0.0
    %141 = vmatpush.msra.mxu0 0.0
    %142 = vmatpush.msra.mxu0 0.0
    %143 = vmatpush.msra.mxu0 0.0
    %144 = vmatpush.msra.mxu0 0.0
    %145 = vmatpush.msra.mxu0 0.0
    %146 = vmatpush.msra.mxu0 %v99
    %147 = vmatpush.msra.mxu0 %v95
    %148 = vmatpush.msra.mxu0 %v91
    %149 = vmatpush.msra.mxu0 %v87
    %150 = vmatpush.msra.mxu0 %v83
    %151 = vmatpush.msra.mxu0 %v79
    %152 = vmatpush.msra.mxu0 %v75
    %153 = vmatpush.msra.mxu0 %v71
    %154 = vmatmul.f32.gmra.mxu0 %v116
    %v155 = vpop.f32.mrf.mxu0
    %v156 = vadd.f32 %v107, %v155
    %157 = vdwg.mxu0
    %158 = vmatpush.msra.mxu0 0.0
    %159 = vmatpush.msra.mxu0 0.0
    %160 = vmatpush.msra.mxu0 0.0
    %161 = vmatpush.msra.mxu0 0.0
    %162 = vmatpush.msra.mxu0 0.0
    %163 = vmatpush.msra.mxu0 0.0
    %164 = vmatpush.msra.mxu0 0.0
    %165 = vmatpush.msra.mxu0 0.0
    %166 = vmatpush.msra.mxu0 %v100
    %167 = vmatpush.msra.mxu0 %v96
    %168 = vmatpush.msra.mxu0 %v92
    %169 = vmatpush.msra.mxu0 %v88
    %170 = vmatpush.msra.mxu0 %v84
    %171 = vmatpush.msra.mxu0 %v80
    %172 = vmatpush.msra.mxu0 %v76
    %173 = vmatpush.msra.mxu0 %v72
    %174 = vmatmul.f32.gmra.mxu0 %v116
    %v175 = vpop.f32.mrf.mxu0
    %v176 = vadd.f32 %v108, %v175
    %177 = vdwg.mxu0
    %178 = vmatpush.msra.mxu0 0.0
    %179 = vmatpush.msra.mxu0 0.0
    %180 = vmatpush.msra.mxu0 0.0
    %181 = vmatpush.msra.mxu0 0.0
    %182 = vmatpush.msra.mxu0 0.0
    %183 = vmatpush.msra.mxu0 0.0
    %184 = vmatpush.msra.mxu0 0.0
    %185 = vmatpush.msra.mxu0 0.0
    %186 = vmatpush.msra.mxu0 %v101
    %187 = vmatpush.msra.mxu0 %v97
    %188 = vmatpush.msra.mxu0 %v93
    %189 = vmatpush.msra.mxu0 %v89
    %190 = vmatpush.msra.mxu0 %v85
    %191 = vmatpush.msra.mxu0 %v81
    %192 = vmatpush.msra.mxu0 %v77
    %193 = vmatpush.msra.mxu0 %v73
    %194 = vmatmul.f32.gmra.mxu0 %v116
    %v195 = vpop.f32.mrf.mxu0
    %v196 = vadd.f32 %v109, %v195
    %197 = vdwg.mxu0
    %s198 = scalar_lea.vmem [#allocation7], 1
    %v199 = vld [vmem:[%s198] ss:$2 sm:$0xf]
    %v201 = vperm.slane %v199, 0
    %v202 = vperm.slane %v199, 1
    %v203 = vperm.slane %v199, 2
    %v204 = vperm.slane %v199, 3
    %v209 = vadd.f32 %v136, %v201
    %v210 = vadd.f32 %v156, %v202
    %v211 = vadd.f32 %v176, %v203
    %v212 = vadd.f32 %v196, %v204
    %v213 = vxor.u32 %v209, 2147483648
    %v214 = vxor.u32 %v210, 2147483648
    %v215 = vxor.u32 %v211, 2147483648
    %v216 = vmul.f32 %v213, 1.442695
    %v217 = vpow.pop %v216
    %v218 = vmul.f32 %v214, 1.442695
    %v219 = vpow.pop %v218
    %v220 = vmul.f32 %v215, 1.442695
    %v221 = vpow.pop %v220
    %v222 = vadd.f32 %v217, 1.0
    %v223 = vadd.f32 %v219, 1.0
    %v224 = vadd.f32 %v221, 1.0
    %v225 = vrcp.pop %v222
    %v226 = vmul.f32 %v222, %v225
    %v227 = vsub.f32 1.0, %v226
    %v228 = vmul.f32 %v225, %v227
    %v229 = vadd.f32 %v225, %v228
    %vm230 = vweird.f32 %v222
    %vm231 = vweird.f32 %v225
    %vm232 = vmor %vm230, %vm231
    %v233 = vsel %vm232, %v225, %v229
    %v234 = vand.u32 2147483647, %v222
    %vm235 = vcmp.eq.f32.partialorder %v234, 8.507059e+37
    %v236 = vand.u32 %v222, 2147483648
    %v237 = vor.u32 1.1754944e-38, %v236
    %v238 = vsel %vm235, %v237, %v233
    %v239 = vmul.f32 1.0, %v238
    %v240 = vrcp.pop %v223
    %v241 = vmul.f32 %v223, %v240
    %v242 = vsub.f32 1.0, %v241
    %v243 = vmul.f32 %v240, %v242
    %v244 = vadd.f32 %v240, %v243
    %vm245 = vweird.f32 %v223
    %vm246 = vweird.f32 %v240
    %vm247 = vmor %vm245, %vm246
    %v248 = vsel %vm247, %v240, %v244
    %v249 = vand.u32 2147483647, %v223
    %vm250 = vcmp.eq.f32.partialorder %v249, 8.507059e+37
    %v251 = vand.u32 %v223, 2147483648
    %v252 = vor.u32 1.1754944e-38, %v251
    %v253 = vsel %vm250, %v252, %v248
    %v254 = vmul.f32 1.0, %v253
    %v255 = vrcp.pop %v224
    %v256 = vmul.f32 %v224, %v255
    %v257 = vsub.f32 1.0, %v256
    %v258 = vmul.f32 %v255, %v257
    %v259 = vadd.f32 %v255, %v258
    %vm260 = vweird.f32 %v224
    %vm261 = vweird.f32 %v255
    %vm262 = vmor %vm260, %vm261
    %v263 = vsel %vm262, %v255, %v259
    %v264 = vand.u32 2147483647, %v224
    %vm265 = vcmp.eq.f32.partialorder %v264, 8.507059e+37
    %v266 = vand.u32 %v224, 2147483648
    %v267 = vor.u32 1.1754944e-38, %v266
    %v268 = vsel %vm265, %v267, %v263
    %v269 = vmul.f32 1.0, %v268
    %v270 = vtanh.pop %v212
    %v271 = vmul.f32 %v254, %v69
    %v272 = vmul.f32 %v239, %v270
    %v273 = vadd.f32 %v271, %v272
    %v274 = vtanh.pop %v273
    %v275 = vmul.f32 %v269, %v274
    %276 = vst [vmem:[#allocation2] sm:$0x1] %v275
    %277 = vst [vmem:[#allocation2 + $0x1] sm:$0x1] %v273
    %v278 = vld [vmem:[%s5] sm:$0x1]
    %v279 = vmul.f32 %v275, %v278
    %v280 = vld [vmem:[%s5 + $0x1] sm:$0x1]
    %v281 = vadd.f32 %v279, %v280
    %vm282 = vcmask 1040384
    %v283 = vsel %vm282, %v281, 0.0
    %284 = vadd.xlane.f32.xlu0 %v283
    %v285 = vpop.xlane.xlu0 %284
    %v286 = vxor.u32 %v285, 2147483648
    %v287 = vmul.f32 %v286, 1.442695
    %v288 = vpow.pop %v287
    %v289 = vadd.f32 %v288, 1.0
    %v290 = vrcp.pop %v289
    %v291 = vmul.f32 %v289, %v290
    %v292 = vsub.f32 1.0, %v291
    %v293 = vmul.f32 %v290, %v292
    %v294 = vadd.f32 %v290, %v293
    %vm295 = vweird.f32 %v289
    %vm296 = vweird.f32 %v290
    %vm297 = vmor %vm295, %vm296
    %v298 = vsel %vm297, %v290, %v294
    %v299 = vand.u32 2147483647, %v289
    %vm300 = vcmp.eq.f32.partialorder %v299, 8.507059e+37
    %v301 = vand.u32 %v289, 2147483648
    %v302 = vor.u32 1.1754944e-38, %v301
    %v303 = vsel %vm300, %v302, %v298
    %v304 = vmul.f32 1.0, %v303
    %v305 = vmul.f32 %v304, 2.0
    %306 = vst [vmem:[#allocation9] sm:$0x1] %v305
    // Predicated region
    $region38: #{decoder_decode.1} parent=1 // pred_check
      %p307 = pneg %p57
    $region39: #{decoder_decode.1} parent=1 // pred_check_branch
      %309 = sbr.rel (%p307) target = $region41
    $region40: #{decoder_decode.1} parent=1 // pred_region
      %v310 = vld [vmem:[#allocation2] sm:$0x3]
      %311 = vst [vmem:[%s7] sm:$0x3] %v310
    $region41: #{decoder_decode.1} parent=1 // pred_fallthru
      _
    // Predicated region
    $region42: #{decoder_decode.1} parent=1 // pred_check
      _
    $region43: #{decoder_decode.1} parent=1 // pred_check_branch
      %313 = sbr.rel (0) target = $region45
    $region44: #{decoder_decode.1} parent=1 // pred_region
      %315 = vsyncadd [#allocation6], 0
      %s317 = sshll.u32 [#allocation9], 4
      %s318 = int_to_ptr.vmem [resolvable:$true] %s317
      %s319 = sshll.u32 %s6, 4
      %s320 = int_to_ptr.hbm [resolvable:$true] %s319
      %322 = dma.vmem_to_hbm [thread:$0]  %s318, 16, %s320, [#allocation6]
    $region45: #{decoder_decode.1} parent=1 // pred_fallthru
      _
    // Predicated region
    $region46: #{decoder_decode.1} parent=1 // pred_check
      _
    $region47: #{decoder_decode.1} parent=1 // pred_check_branch
      %324 = sbr.rel (0) target = $region49
    $region48: #{decoder_decode.1} parent=1 // pred_region
      _
    $region49: #{decoder_decode.1} parent=1 // pred_fallthru
      _
    // Predicated region
    $region50: #{decoder_decode.1} parent=1 // pred_check
      _
    $region51: #{decoder_decode.1} parent=1 // pred_check_branch
      %326 = sbr.rel (0) target = $region53
    $region52: #{decoder_decode.1} parent=1 // pred_region
      %328 = dma.done [#allocation6], 16
    $region53: #{decoder_decode.1} parent=1 // pred_fallthru
      _
    // Predicated region
    $region54: #{decoder_decode.1} parent=1 // pred_check
      _
    $region55: #{decoder_decode.1} parent=1 // pred_check_branch
      %330 = sbr.rel (0) target = $region57
    $region56: #{decoder_decode.1} parent=1 // pred_region
      _
    $region57: #{decoder_decode.1} parent=1 // pred_fallthru
      _
    %331 = vsyncpa [#allocation5], 1
    %332 = vsyncpa [#allocation8], 1
    %333 = vsyncpa [#allocation6], 1

</llo_original>
